<compile_context>
chip_gen: v7x
topology: tpu7x:2x2x1
jax: 0.10.0
libtpu: 0.0.40
codegen_flags: <defaults>
</compile_context>

<pallas_src>
import jax
import jax.numpy as jnp
from jax import lax
from jax.experimental import pallas as pl
from jax.experimental.pallas import tpu as pltpu


def _round_up(v: int, m: int) -> int:
    return ((v + m - 1) // m) * m


def _action_head_kernel(x_ref, w_ref, b_ref, o_ref, acc_ref):
    # x_ref: [tile_b, tile_k]   w_ref: [2, tile_k] (lane-dense, resident per k)
    # b_ref: [1, 2] f32         o_ref: [tile_b, 2]   acc_ref: [tile_b, 2] f32
    k = pl.program_id(1)

    @pl.when(k == 0)
    def _():
        acc_ref[...] = jnp.zeros_like(acc_ref)

    acc_ref[...] += lax.dot_general(
        x_ref[...], w_ref[...],
        dimension_numbers=(((1,), (1,)), ((), ())),
        preferred_element_type=jnp.float32)

    @pl.when(k == pl.num_programs(1) - 1)
    def _():
        o_ref[...] = (acc_ref[...] + b_ref[...]).astype(o_ref.dtype)


def fuse_action_head_params(w_a, b_a, w_steer, b_steer):
    """One-time parameter fusion (call at init, NOT per forward).

    w_a, w_steer: [D, 1]; b_a, b_steer: [1].
    Returns W [2, D] (row 0 = 'a', row 1 = 'steer'), b [1, 2] — lane-dense W.
    """
    w = jnp.concatenate([w_a, w_steer], axis=1).T            # [2, D]
    b = jnp.concatenate([b_a, b_steer], axis=0).reshape(1, 2)  # [1, 2]
    return w, b


def action_head_forward(x, w_fused, b_fused, *, tile_k=None, use_pallas=None):
    """Forward for ActionHead.

    Args:
      x:       [B, D] (f32 or bf16)
      w_fused: [2, D]  (rows = heads 'a', 'steer')
      b_fused: [1, 2]  f32
    Returns:
      dict {'a': [B, 1], 'steer': [B, 1]}
    """
    B, D = x.shape
    itemsize = jnp.dtype(x.dtype).itemsize

    # ---- small-problem fast path (dispatch overhead would dominate) --------
    if use_pallas is None:
        use_pallas = (B * D * itemsize) >= (256 * 1024)
    if not use_pallas:
        y = (jnp.dot(x, w_fused.T, preferred_element_type=jnp.float32)
             + b_fused).astype(x.dtype)
        return {"a": y[:, 0:1], "steer": y[:, 1:2]}

    # ---- K (feature) tiling: bound the x tile for very large D -------------
    if tile_k is None:
        tile_k = D
        if D > 2048:
            for cand in (2048, 1024, 512, 256, 128):
                if D % cand == 0:
                    tile_k = cand
                    break
    tile_k = min(tile_k, D)
    if D % tile_k != 0:
        # Padded-K garbage would corrupt the accumulation; fall back to full D.
        tile_k = D
    grid_k = D // tile_k

    # ---- batch tiling: biggest 8-aligned tile that fits the VMEM budget ----
    # Working set per batch-tile: 2 x-buffers (double-buffered) plus the
    # lane-padded (->128) output double-buffer and accumulator scratch.
    vmem_budget = 12 * 1024 * 1024                       # < v5e 16 MiB scoped default
    row_bytes = 2 * tile_k * itemsize + 3 * 128 * 4
    if B <= 16:
        tile_b = B                                       # full-dim block, layout-legal
    else:
        tile_b = max(8, (vmem_budget // row_bytes) // 8 * 8)
        # Keep >=2 batch tiles so the "parallel" axis can shard across the two
        # TensorCores on v7x (harmless on v5e/v6e).
        tile_b = min(tile_b, _round_up(pl.cdiv(B, 2), 8))
    grid_b = pl.cdiv(B, tile_b)

    cost = pl.CostEstimate(
        flops=2 * B * D * 2,
        bytes_accessed=B * D * itemsize + 2 * D * itemsize + 2 * 4 + B * 2 * itemsize,
        transcendentals=0,
    )

    out = pl.pallas_call(
        _action_head_kernel,
        out_shape=jax.ShapeDtypeStruct((B, 2), x.dtype),
        grid_spec=pltpu.PrefetchScalarGridSpec(
            num_scalar_prefetch=0,
            grid=(grid_b, grid_k),
            in_specs=[
                pl.BlockSpec((tile_b, tile_k), lambda i, k: (i, k)),  # x: tiled B x K
                pl.BlockSpec((2, tile_k), lambda i, k: (0, k)),       # W: lane-dense
                pl.BlockSpec((1, 2), lambda i, k: (0, 0)),            # bias: resident
            ],
            out_specs=pl.BlockSpec((tile_b, 2), lambda i, k: (i, 0)),
            scratch_shapes=[pltpu.VMEM((tile_b, 2), jnp.float32)],    # f32 accumulator
        ),
        compiler_params=pltpu.CompilerParams(
            dimension_semantics=("parallel", "arbitrary")),
        cost_estimate=cost,
    )(x, w_fused, b_fused)

    return {"a": out[:, 0:1], "steer": out[:, 1:2]}


def _init_linear(key, in_dim, out_dim):
    # Deterministic init mimicking torch.nn.Linear default (uniform +/- 1/sqrt(in_dim)).
    k_w, k_b = jax.random.split(key)
    bound = 1.0 / jnp.sqrt(jnp.float32(in_dim))
    w = jax.random.uniform(k_w, (in_dim, out_dim), jnp.float32, -bound, bound)
    b = jax.random.uniform(k_b, (out_dim,), jnp.float32, -bound, bound)
    return w, b


def _run_case(key, B, D, tile_k=None):
    k_x, k_a, k_s = jax.random.split(key, 3)
    x = jax.random.normal(k_x, (B, D), jnp.float32)
    w_a, b_a = _init_linear(k_a, D, 1)
    w_steer, b_steer = _init_linear(k_s, D, 1)

    w_fused, b_fused = fuse_action_head_params(w_a, b_a, w_steer, b_steer)

    fwd = jax.jit(lambda x, w, b: action_head_forward(
        x, w, b, tile_k=tile_k, use_pallas=True))
    out = fwd(x, w_fused, b_fused)
    jax.block_until_ready(out)

    ref_a = x @ w_a + b_a[None, :]
    ref_s = x @ w_steer + b_steer[None, :]
    assert out["a"].shape == (B, 1) and out["steer"].shape == (B, 1)
    assert jnp.allclose(out["a"], ref_a, atol=1e-4, rtol=1e-5)
    assert jnp.allclose(out["steer"], ref_s, atol=1e-4, rtol=1e-5)


if __name__ == "__main__":
    root = jax.random.PRNGKey(0)
    k0, k1, k2 = jax.random.split(root, 3)

    # Module-sized example (batch=2, input_dim=32): single tile, single K block.
    _run_case(k0, B=2, D=32)
    # Batch tiling path (>=2 tiles for the "parallel" axis).
    _run_case(k1, B=64, D=256)
    # K-tiled accumulation path (grid_k = 3).
    _run_case(k2, B=32, D=384, tile_k=128)

    print("KERNEL_OK")
</pallas_src>

<mosaic_0001>
module attributes {stable_mosaic.version = 11 : i64} {
  func.func @_action_head_kernel(%arg0: i32, %arg1: i32, %arg2: memref<2x32xf32, #tpu.memory_space<vmem>>, %arg3: memref<2x32xf32, #tpu.memory_space<vmem>>, %arg4: memref<1x2xf32, #tpu.memory_space<vmem>>, %arg5: memref<2x2xf32, #tpu.memory_space<vmem>>, %arg6: memref<2x2xf32, #tpu.memory_space<vmem>>) attributes {dimension_semantics = [#tpu.dimension_semantics<parallel>, #tpu.dimension_semantics<arbitrary>], iteration_bounds = array<i64: 1, 1>, scalar_prefetch = 0 : i64, scratch_operands = 1 : i64, tpu.core_type = #tpu.core_type<tc>, window_params = [{transform_indices = @transform_0, window_bounds = array<i64: 2, 32>}, {transform_indices = @transform_1, window_bounds = array<i64: 2, 32>}, {pipeline_mode = #tpu.pipeline_mode<synchronous>, transform_indices = @transform_2, window_bounds = array<i64: 1, 2>}, {transform_indices = @transform_3, window_bounds = array<i64: 2, 2>}]} {
    %c0_i32 = arith.constant 0 : i32
    %0 = arith.cmpi eq, %arg1, %c0_i32 : i32
    %1 = arith.extui %0 : i1 to i32
    %c0_i32_0 = arith.constant 0 : i32
    %2 = arith.cmpi ne, %1, %c0_i32_0 : i32
    scf.if %2 {
      %cst_10 = arith.constant 0.000000e+00 : f32
      %12 = vector.broadcast %cst_10 : f32 to vector<2x2xf32>
      %c0_11 = arith.constant 0 : index
      %c0_12 = arith.constant 0 : index
      %13 = vector.load %arg6[%c0_11, %c0_12] : memref<2x2xf32, #tpu.memory_space<vmem>>, vector<2x2xf32>
      tpu.vector_store %arg6[%c0_11, %c0_12], %12 {strides = array<i32>} : memref<2x2xf32, #tpu.memory_space<vmem>>, vector<2x2xf32>,
    } else {
    }
    %c0 = arith.constant 0 : index
    %c0_1 = arith.constant 0 : index
    %3 = vector.load %arg6[%c0, %c0_1] : memref<2x2xf32, #tpu.memory_space<vmem>>, vector<2x2xf32>
    %c0_2 = arith.constant 0 : index
    %c0_3 = arith.constant 0 : index
    %4 = vector.load %arg2[%c0_2, %c0_3] : memref<2x32xf32, #tpu.memory_space<vmem>>, vector<2x32xf32>
    %c0_4 = arith.constant 0 : index
    %c0_5 = arith.constant 0 : index
    %5 = vector.load %arg3[%c0_4, %c0_5] : memref<2x32xf32, #tpu.memory_space<vmem>>, vector<2x32xf32>
    %cst = arith.constant dense<0.000000e+00> : vector<2x2xf32>
    %6 = tpu.matmul %4, %5, %cst {dimension_numbers = #tpu.dot_dimension_numbers<[1], [1], [0], [0], [0, 0, 1, 0], [], []>} : vector<2x32xf32>, vector<2x32xf32>, vector<2x2xf32> -> vector<2x2xf32>
    %7 = arith.addf %3, %6 : vector<2x2xf32>
    %c0_6 = arith.constant 0 : index
    %c0_7 = arith.constant 0 : index
    %8 = vector.load %arg6[%c0_6, %c0_7] : memref<2x2xf32, #tpu.memory_space<vmem>>, vector<2x2xf32>
    tpu.vector_store %arg6[%c0_6, %c0_7], %7 {strides = array<i32>} : memref<2x2xf32, #tpu.memory_space<vmem>>, vector<2x2xf32>,
    %c0_i32_8 = arith.constant 0 : i32
    %9 = arith.cmpi eq, %arg1, %c0_i32_8 : i32
    %10 = arith.extui %9 : i1 to i32
    %c0_i32_9 = arith.constant 0 : i32
    %11 = arith.cmpi ne, %10, %c0_i32_9 : i32
    scf.if %11 {
      %c0_10 = arith.constant 0 : index
      %c0_11 = arith.constant 0 : index
      %12 = vector.load %arg6[%c0_10, %c0_11] : memref<2x2xf32, #tpu.memory_space<vmem>>, vector<2x2xf32>
      %c0_12 = arith.constant 0 : index
      %c0_13 = arith.constant 0 : index
      %13 = vector.load %arg4[%c0_12, %c0_13] : memref<1x2xf32, #tpu.memory_space<vmem>>, vector<1x2xf32>
      %14 = vector.broadcast %13 : vector<1x2xf32> to vector<2x2xf32>
      %15 = arith.addf %12, %14 : vector<2x2xf32>
      %c0_14 = arith.constant 0 : index
      %c0_15 = arith.constant 0 : index
      %16 = vector.load %arg5[%c0_14, %c0_15] : memref<2x2xf32, #tpu.memory_space<vmem>>, vector<2x2xf32>
      tpu.vector_store %arg5[%c0_14, %c0_15], %15 {strides = array<i32>} : memref<2x2xf32, #tpu.memory_space<vmem>>, vector<2x2xf32>,
    } else {
    }
    return
  }
  func.func @transform_0(%arg0: i32, %arg1: i32) -> (i32, i32) {
    %c0_i32 = arith.constant 0 : i32
    return %arg0, %arg1 : i32, i32
  }
  func.func @transform_1(%arg0: i32, %arg1: i32) -> (i32, i32) {
    %c0_i32 = arith.constant 0 : i32
    %c0_i32_0 = arith.constant 0 : i32
    return %c0_i32, %arg1 : i32, i32
  }
  func.func @transform_2(%arg0: i32, %arg1: i32) -> (i32, i32) {
    %c0_i32 = arith.constant 0 : i32
    %c0_i32_0 = arith.constant 0 : i32
    %c0_i32_1 = arith.constant 0 : i32
    return %c0_i32, %c0_i32_0 : i32, i32
  }
  func.func @transform_3(%arg0: i32, %arg1: i32) -> (i32, i32) {
    %c0_i32 = arith.constant 0 : i32
    %c0_i32_0 = arith.constant 0 : i32
    return %arg0, %c0_i32 : i32, i32
  }
}

</mosaic_0001>

<llo_original>
// kernel: _lambda_.1
$region0: #{_lambda_.1}
  #allocation0 [shape = 'u32[]', space=smem, size = 0x4, offset = 0x4, fixed_abs, tag = 'smem constant byte address 0x4 - core index']
  #allocation1 [shape = 'u32[144,128]{1,0:T(1,128)}', space=vmem, size = 0x12000, scoped, tag = 'internal scratch']
  #allocation2 [shape = 'f32[2,2]{1,0:T(2,128)}', space=vmem, size = 0x400, scoped, tag = 'scratch operand']
  %s0 = inlined_call_operand.hbm [shape: f32[2,32], index: 0, kind: input, shape index: {}]
  %s1 = inlined_call_operand.vmem [shape: f32[2,32], index: 1, kind: input, shape index: {}]
  %s2 = inlined_call_operand.vmem [shape: f32[1,2], index: 2, kind: input, shape index: {}]
  %s3 = inlined_call_operand.vmem [shape: f32[2,2], index: 3, kind: output, shape index: {}]
  %s4 = sld [smem:[#allocation0]]
  $region34: #{_lambda_.1} parent=0
    _
  %s6 = ssub.s32 1, %s4
  %s7 = scalar_select 0, %s6, %s4
  $region1: #{_lambda_.1} parent=0
    #allocation3 [shape = 'u8[1024]{0}', space=vmem, size = 0x400, scoped, tag = 'input window, operand 0, single buffered']
    #allocation4 [shape = 's32[1]{0}', space=sflag, size = 0x4, scoped, tag = 'scoped memory for _lambda_.1']
    %8 = vsyncpa [#allocation4], 0
    // Predicated region
    $region2: #{_lambda_.1} parent=1 // pred_check
      _
    $region3: #{_lambda_.1} parent=1 // pred_check_branch
      %10 = sbr.rel (0) target = $region5
    $region4: #{_lambda_.1} parent=1 // pred_region
      %s12 = ssub.s32 32, 32
      %13 = vsyncadd [#allocation4], %s12
      %s15 = sshll.u32 [#allocation3], 4
      %s16 = int_to_ptr.vmem [resolvable:$true] %s15
      %18 = dma.hbm_to_vmem [thread:$0]  %s0, 32, %s16, [#allocation4]
    $region5: #{_lambda_.1} parent=1 // pred_fallthru
      _
    // Predicated region
    $region6: #{_lambda_.1} parent=1 // pred_check
      _
    $region7: #{_lambda_.1} parent=1 // pred_check_branch
      %20 = sbr.rel (0) target = $region9
    $region8: #{_lambda_.1} parent=1 // pred_region
      _
    $region9: #{_lambda_.1} parent=1 // pred_fallthru
      _
    // Predicated region
    $region10: #{_lambda_.1} parent=1 // pred_check
      _
    $region11: #{_lambda_.1} parent=1 // pred_check_branch
      %22 = sbr.rel (0) target = $region13
    $region12: #{_lambda_.1} parent=1 // pred_region
      _
    $region13: #{_lambda_.1} parent=1 // pred_fallthru
      _
    // Predicated region
    $region14: #{_lambda_.1} parent=1 // pred_check
      _
    $region15: #{_lambda_.1} parent=1 // pred_check_branch
      %24 = sbr.rel (0) target = $region17
    $region16: #{_lambda_.1} parent=1 // pred_region
      %25 = dma.done [#allocation4], 32
    $region17: #{_lambda_.1} parent=1 // pred_fallthru
      _
    %p26 = scmp.eq.s32.totalorder 0, 0
    // Predicated region
    $region18: #{_lambda_.1} parent=1 // pred_check
      %p27 = pneg %p26
    $region19: #{_lambda_.1} parent=1 // pred_check_branch
      %29 = sbr.rel (%p27) target = $region21
    $region20: #{_lambda_.1} parent=1 // pred_region
      %vm30 = vcmask 9216
      %31 = vst.msk [vmem:[#allocation2] sm:$0x3] %vm30, 0.0
    $region21: #{_lambda_.1} parent=1 // pred_fallthru
      _
    %v32 = vld [vmem:[#allocation2] sm:$0x3]
    %v33 = vld [vmem:[#allocation3] sm:$0x3]
    %v34 = vld [vmem:[%s1] sm:$0x3]
    %vm35 = vcmask 261120
    %v37 = vsel %vm35, %v33, 0
    %v40 = vsel %vm35, %v34, 0
    %42 = vmatprep.subr.mxu0 0.0
    %43 = vmatpush1.xpose.msra.mxu0 %v40
    %44 = vmatprep.subr.mxu0 0.0
    %45 = vmatpush1.xpose.msra.mxu0 0.0
    %46 = vmatprep.subr.mxu0 0.0
    %47 = vmatpush1.xpose.msra.mxu0 0.0
    %48 = vmatprep.subr.mxu0 0.0
    %49 = vmatpush1.xpose.msra.mxu0 0.0
    %50 = vmatprep.subr.mxu0 0.0
    %51 = vmatpush1.xpose.msra.mxu0 0.0
    %52 = vmatprep.subr.mxu0 0.0
    %53 = vmatpush1.xpose.msra.mxu0 0.0
    %54 = vmatprep.subr.mxu0 0.0
    %55 = vmatpush1.xpose.msra.mxu0 0.0
    %56 = vmatprep.subr.mxu0 0.0
    %57 = vmatpush1.xpose.msra.mxu0 0.0
    %58 = vmatprep.subr.mxu0 0.0
    %59 = vmatpush1.xpose.msra.mxu0 0.0
    %60 = vmatprep.subr.mxu0 0.0
    %61 = vmatpush1.xpose.msra.mxu0 0.0
    %62 = vmatprep.subr.mxu0 0.0
    %63 = vmatpush1.xpose.msra.mxu0 0.0
    %64 = vmatprep.subr.mxu0 0.0
    %65 = vmatpush1.xpose.msra.mxu0 0.0
    %66 = vmatprep.subr.mxu0 0.0
    %67 = vmatpush1.xpose.msra.mxu0 0.0
    %68 = vmatprep.subr.mxu0 0.0
    %69 = vmatpush1.xpose.msra.mxu0 0.0
    %70 = vmatprep.subr.mxu0 0.0
    %71 = vmatpush1.xpose.msra.mxu0 0.0
    %72 = vmatprep.subr.mxu0 0.0
    %73 = vmatpush1.xpose.msra.mxu0 0.0
    %74 = vmatprep.subr.mxu0 0.0
    %75 = vmatpush1.xpose.msra.mxu0 0.0
    %76 = vmatprep.subr.mxu0 0.0
    %77 = vmatpush1.xpose.msra.mxu0 0.0
    %78 = vmatprep.subr.mxu0 0.0
    %79 = vmatpush1.xpose.msra.mxu0 0.0
    %80 = vmatprep.subr.mxu0 0.0
    %81 = vmatpush1.xpose.msra.mxu0 0.0
    %82 = vmatprep.subr.mxu0 0.0
    %83 = vmatpush1.xpose.msra.mxu0 0.0
    %84 = vmatprep.subr.mxu0 0.0
    %85 = vmatpush1.xpose.msra.mxu0 0.0
    %86 = vmatprep.subr.mxu0 0.0
    %87 = vmatpush1.xpose.msra.mxu0 0.0
    %88 = vmatprep.subr.mxu0 0.0
    %89 = vmatpush1.xpose.msra.mxu0 0.0
    %90 = vmatprep.subr.mxu0 0.0
    %91 = vmatpush1.xpose.msra.mxu0 0.0
    %92 = vmatprep.subr.mxu0 0.0
    %93 = vmatpush1.xpose.msra.mxu0 0.0
    %94 = vmatprep.subr.mxu0 0.0
    %95 = vmatpush1.xpose.msra.mxu0 0.0
    %96 = vmatprep.subr.mxu0 0.0
    %97 = vmatpush1.xpose.msra.mxu0 0.0
    %98 = vmatprep.subr.mxu0 0.0
    %99 = vmatpush1.xpose.msra.mxu0 0.0
    %100 = vmatprep.subr.mxu0 0.0
    %101 = vmatpush1.xpose.msra.mxu0 0.0
    %102 = vmatprep.subr.mxu0 0.0
    %103 = vmatpush1.xpose.msra.mxu0 0.0
    %104 = vmatprep.subr.mxu0 0.0
    %105 = vmatpush1.xpose.msra.mxu0 0.0
    %106 = vmatprep.mubr.f32.mxu0 0.0
    %107 = vmatmul.mubr.f32.gmra.mrb[0].mxu0 %v37
    %v108 = vpop.f32.mrb[0].mxu0
    %v109 = vadd.f32 0.0, %v108
    %v110 = vpop.f32.mrb[0].mxu0
    %111 = vdwg.mxu0
    %v112 = vadd.f32 %v32, %v109
    %vm113 = vcmask 9216
    %114 = vst.msk [vmem:[#allocation2] sm:$0x3] %vm113, %v112
    // Predicated region
    $region22: #{_lambda_.1} parent=1 // pred_check
      %p115 = pneg %p26
    $region23: #{_lambda_.1} parent=1 // pred_check_branch
      %117 = sbr.rel (%p115) target = $region25
    $region24: #{_lambda_.1} parent=1 // pred_region
      %v118 = vld [vmem:[#allocation2] sm:$0x3]
      %v119 = vld [vmem:[%s2] sm:$0x1]
      %v121 = vlaneseq
      %v122 = vshrl.u32 %v121, 7
      %v123 = vsub.s32 0, %v122
      %v124 = vrot.slane %v119, %v123
      %v126 = vadd.f32 %v118, %v124
      %127 = vst.msk [vmem:[%s3] sm:$0x3] %vm113, %v126
    $region25: #{_lambda_.1} parent=1 // pred_fallthru
      _
    // Predicated region
    $region26: #{_lambda_.1} parent=1 // pred_check
      _
    $region27: #{_lambda_.1} parent=1 // pred_check_branch
      %129 = sbr.rel (0) target = $region29
    $region28: #{_lambda_.1} parent=1 // pred_region
      _
    $region29: #{_lambda_.1} parent=1 // pred_fallthru
      _
    // Predicated region
    $region30: #{_lambda_.1} parent=1 // pred_check
      _
    $region31: #{_lambda_.1} parent=1 // pred_check_branch
      %131 = sbr.rel (0) target = $region33
    $region32: #{_lambda_.1} parent=1 // pred_region
      _
    $region33: #{_lambda_.1} parent=1 // pred_fallthru
      _
    %132 = vsyncpa [#allocation4], 1

</llo_original>
